<compile_context>
chip_gen: v5e
topology: v5e:2x2
jax: 0.10.0
libtpu: 0.0.40
codegen_flags: <defaults>
</compile_context>

<pallas_src>
import jax
import jax.numpy as jnp
from jax.experimental import pallas as pl
from jax.experimental.pallas import tpu as pltpu


_VMEM_LIMIT = 32 << 20   # explicit scoped-VMEM limit: safe on v5e/v6e (128 MiB
                         # physical) and v7x (64 MiB physical)
_VMEM_BUDGET = 24 << 20  # what the tile chooser targets (headroom vs. limit)


def _bcast_mul_kernel(x_ref, w_ref, o_ref):
    # x_ref: (B, TR, LANE)  w_ref: (1, TR, LANE)  o_ref: (B, TR, LANE)
    # (also works for the 2-D fallback: (B, N) * (1, N))
    # Leading-dim broadcast: w's vregs are simply reused per batch slice.
    o_ref[...] = x_ref[...] * w_ref[...]


def _choose_tile_rows(rows, batch, lane, itemsize):
    # Per tile-row VMEM cost: x and out are double-buffered (B rows each),
    # w is double-buffered (1 row).
    per_row = (2 * batch + 2 * batch + 2) * lane * itemsize
    max_rows = max(8, _VMEM_BUDGET // per_row)
    if rows <= max_rows:
        return rows                       # whole row extent -> grid of 1
    tile = min(max_rows, 1024)            # >=512-row tiles ~ HBM roofline
    return max(8, tile - (tile % 8))      # 2nd-to-last block dim must be 8-aligned


def broadcast_mul(x, w):
    """Compute x * w where x is (B, C, H, W) and w is (1, C, H, W)."""
    B, C, H, W = x.shape
    assert w.shape == (1, C, H, W)
    itemsize = jnp.dtype(x.dtype).itemsize

    cost = pl.CostEstimate(
        flops=B * C * H * W,
        transcendentals=0,
        bytes_accessed=(2 * B * C * H * W + C * H * W) * itemsize,
    )

    if W % 128 == 0:
        # Lane-dense, sublane-dense fast path.
        rows, lane = C * H, W
        x3d = x.reshape(B, rows, lane)
        w3d = w.reshape(1, rows, lane)
        tile_r = _choose_tile_rows(rows, B, lane, itemsize)
        grid = (pl.cdiv(rows, tile_r),)

        out3d = pl.pallas_call(
            _bcast_mul_kernel,
            out_shape=jax.ShapeDtypeStruct((B, rows, lane), x.dtype),
            grid=grid,
            in_specs=[
                pl.BlockSpec((B, tile_r, lane), lambda r: (0, r, 0)),
                pl.BlockSpec((1, tile_r, lane), lambda r: (0, r, 0)),
            ],
            out_specs=pl.BlockSpec((B, tile_r, lane), lambda r: (0, r, 0)),
            compiler_params=pltpu.CompilerParams(
                dimension_semantics=("parallel",),
                vmem_limit_bytes=_VMEM_LIMIT,
            ),
            cost_estimate=cost,
        )(x3d, w3d)
        return out3d.reshape(B, C, H, W)

    # Fallback: last dim not a multiple of 128 -> one VMEM-resident 2-D tile.
    # Correct, but stores are masked partial vst (slower); only for small sizes.
    # TODO(synk): a padded / re-folded layout would be needed to keep the
    #             lane-dense fast path for awkward W at large sizes.
    N = C * H * W
    x2d = x.reshape(B, N)
    w2d = w.reshape(1, N)
    out2d = pl.pallas_call(
        _bcast_mul_kernel,
        out_shape=jax.ShapeDtypeStruct((B, N), x.dtype),
        in_specs=[
            pl.BlockSpec(memory_space=pltpu.MemorySpace.VMEM),
            pl.BlockSpec(memory_space=pltpu.MemorySpace.VMEM),
        ],
        out_specs=pl.BlockSpec(memory_space=pltpu.MemorySpace.VMEM),
        compiler_params=pltpu.CompilerParams(vmem_limit_bytes=_VMEM_LIMIT),
        cost_estimate=cost,
    )(x2d, w2d)
    return out2d.reshape(B, C, H, W)


class Model:
    def __init__(self, key, C=4, H=16, W=128):
        # Parameter analogous to self.conv1x1_weight_bias (leading dim of 1,
        # broadcast over the batch axis of x).
        self.conv1x1_weight_bias = jax.random.normal(
            key, (1, C, H, W), dtype=jnp.float32
        )

    def forward(self, x7):
        v1 = self.conv1x1_weight_bias
        v2 = broadcast_mul(x7, v1)
        return v2


if __name__ == "__main__":
    key = jax.random.PRNGKey(0)
    k_param, k_x = jax.random.split(key)

    B, C, H, W = 2, 4, 16, 128
    model = Model(k_param, C=C, H=H, W=W)
    x7 = jax.random.normal(k_x, (B, C, H, W), dtype=jnp.float32)

    out = model.forward(x7)
    out = jax.block_until_ready(out)

    # correctness check against plain-JAX reference
    ref = x7 * model.conv1x1_weight_bias
    assert out.shape == (B, C, H, W)
    assert jnp.allclose(out, ref, atol=1e-6, rtol=1e-6)

    print("KERNEL_OK")
</pallas_src>

<mosaic_0001>
module attributes {stable_mosaic.version = 11 : i64} {
  func.func @_bcast_mul_kernel(%arg0: i32, %arg1: memref<2x64x128xf32, #tpu.memory_space<vmem>>, %arg2: memref<1x64x128xf32, #tpu.memory_space<vmem>>, %arg3: memref<2x64x128xf32, #tpu.memory_space<vmem>>) attributes {dimension_semantics = [#tpu.dimension_semantics<parallel>], iteration_bounds = array<i64: 1>, scalar_prefetch = 0 : i64, scratch_operands = 0 : i64, tpu.core_type = #tpu.core_type<tc>, window_params = [{transform_indices = @transform_0, window_bounds = array<i64: 2, 64, 128>}, {transform_indices = @transform_1, window_bounds = array<i64: 1, 64, 128>}, {transform_indices = @transform_2, window_bounds = array<i64: 2, 64, 128>}]} {
    %c0 = arith.constant 0 : index
    %c0_0 = arith.constant 0 : index
    %c0_1 = arith.constant 0 : index
    %0 = vector.load %arg1[%c0, %c0_0, %c0_1] : memref<2x64x128xf32, #tpu.memory_space<vmem>>, vector<2x64x128xf32>
    %c0_2 = arith.constant 0 : index
    %c0_3 = arith.constant 0 : index
    %c0_4 = arith.constant 0 : index
    %1 = vector.load %arg2[%c0_2, %c0_3, %c0_4] : memref<1x64x128xf32, #tpu.memory_space<vmem>>, vector<1x64x128xf32>
    %2 = vector.broadcast %1 : vector<1x64x128xf32> to vector<2x64x128xf32>
    %3 = arith.mulf %0, %2 : vector<2x64x128xf32>
    %c0_5 = arith.constant 0 : index
    %c0_6 = arith.constant 0 : index
    %c0_7 = arith.constant 0 : index
    %4 = vector.load %arg3[%c0_5, %c0_6, %c0_7] : memref<2x64x128xf32, #tpu.memory_space<vmem>>, vector<2x64x128xf32>
    tpu.vector_store %arg3[%c0_5, %c0_6, %c0_7], %3 {strides = array<i32>} : memref<2x64x128xf32, #tpu.memory_space<vmem>>, vector<2x64x128xf32>,
    return
  }
  func.func @transform_0(%arg0: i32) -> (i32, i32, i32) {
    %c0_i32 = arith.constant 0 : i32
    %c0_i32_0 = arith.constant 0 : i32
    %c0_i32_1 = arith.constant 0 : i32
    return %c0_i32, %arg0, %c0_i32_0 : i32, i32, i32
  }
  func.func @transform_1(%arg0: i32) -> (i32, i32, i32) {
    %c0_i32 = arith.constant 0 : i32
    %c0_i32_0 = arith.constant 0 : i32
    %c0_i32_1 = arith.constant 0 : i32
    return %c0_i32, %arg0, %c0_i32_0 : i32, i32, i32
  }
  func.func @transform_2(%arg0: i32) -> (i32, i32, i32) {
    %c0_i32 = arith.constant 0 : i32
    %c0_i32_0 = arith.constant 0 : i32
    %c0_i32_1 = arith.constant 0 : i32
    return %c0_i32, %arg0, %c0_i32_0 : i32, i32, i32
  }
}

</mosaic_0001>

<llo_original>
// kernel: tpu_custom_call.1
$region0: #{tpu_custom_call.1}
  #allocation0 [shape = 'u32[]', space=smem, size = 0x4, offset = 0x4, fixed_abs, tag = 'smem constant byte address 0x4 - core index']
  #allocation1 [shape = 'u32[72,128]{1,0:T(1,128)}', space=vmem, size = 0x9000, scoped, tag = 'internal scratch']
  %s0 = inlined_call_operand.hbm [shape: f32[2,64,128], index: 0, kind: input, shape index: {}]
  %s1 = inlined_call_operand.hbm [shape: f32[1,64,128], index: 1, kind: input, shape index: {}]
  %s2 = inlined_call_operand.hbm [shape: f32[2,64,128], index: 2, kind: output, shape index: {}]
  %s3 = sld [smem:[#allocation0]]
  $region26: #{tpu_custom_call.1} parent=0
    _
  %s5 = ssub.s32 1, %s3
  %s6 = scalar_select 0, %s5, %s3
  $region1: #{tpu_custom_call.1} parent=0
    #allocation2 [shape = 'u8[65536]{0}', space=vmem, size = 0x10000, scoped, tag = 'input window, operand 0, single buffered']
    #allocation3 [shape = 's32[1]{0}', space=sflag, size = 0x4, scoped, tag = 'scoped memory for tpu_custom_call.1']
    #allocation4 [shape = 's32[1]{0}', space=sflag, size = 0x4, scoped, tag = 'scoped memory for tpu_custom_call.1']
    #allocation5 [shape = 'u8[32768]{0}', space=vmem, size = 0x8000, scoped, tag = 'input window, operand 1, single buffered']
    #allocation6 [shape = 's32[1]{0}', space=sflag, size = 0x4, scoped, tag = 'scoped memory for tpu_custom_call.1']
    #allocation7 [shape = 'u8[65536]{0}', space=vmem, size = 0x10000, scoped, tag = 'output window, operand 0, single buffered']
    %7 = vsyncpa [#allocation3], 0
    %8 = vsyncpa [#allocation6], 0
    %9 = vsyncpa [#allocation4], 0
    // Predicated region
    $region2: #{tpu_custom_call.1} parent=1 // pred_check
      _
    $region3: #{tpu_custom_call.1} parent=1 // pred_check_branch
      %11 = sbr.rel (0) target = $region5
    $region4: #{tpu_custom_call.1} parent=1 // pred_region
      %13 = vsyncadd [#allocation3], 0
      %s14 = sshll.u32 %s0, 4
      %s15 = int_to_ptr.hbm [resolvable:$true] %s14
      %s16 = sshll.u32 [#allocation2], 4
      %s17 = int_to_ptr.vmem [resolvable:$true] %s16
      %22 = dma.hbm_to_vmem [thread:$0]  %s15, 2048, %s17, [#allocation3], 128, 128, 8
    $region5: #{tpu_custom_call.1} parent=1 // pred_fallthru
      _
    // Predicated region
    $region6: #{tpu_custom_call.1} parent=1 // pred_check
      _
    $region7: #{tpu_custom_call.1} parent=1 // pred_check_branch
      %24 = sbr.rel (0) target = $region9
    $region8: #{tpu_custom_call.1} parent=1 // pred_region
      %26 = vsyncadd [#allocation6], 0
      %s27 = sshll.u32 %s1, 4
      %s28 = int_to_ptr.hbm [resolvable:$true] %s27
      %s29 = sshll.u32 [#allocation5], 4
      %s30 = int_to_ptr.vmem [resolvable:$true] %s29
      %35 = dma.hbm_to_vmem [thread:$0]  %s28, 1024, %s30, [#allocation6], 128, 128, 8
    $region9: #{tpu_custom_call.1} parent=1 // pred_fallthru
      _
    // Predicated region
    $region10: #{tpu_custom_call.1} parent=1 // pred_check
      _
    $region11: #{tpu_custom_call.1} parent=1 // pred_check_branch
      %37 = sbr.rel (0) target = $region13
    $region12: #{tpu_custom_call.1} parent=1 // pred_region
      %39 = dma.done [#allocation3], 2048
    $region13: #{tpu_custom_call.1} parent=1 // pred_fallthru
      _
    // Predicated region
    $region14: #{tpu_custom_call.1} parent=1 // pred_check
      _
    $region15: #{tpu_custom_call.1} parent=1 // pred_check_branch
      %41 = sbr.rel (0) target = $region17
    $region16: #{tpu_custom_call.1} parent=1 // pred_region
      %43 = dma.done [#allocation6], 1024
    $region17: #{tpu_custom_call.1} parent=1 // pred_fallthru
      _
    %v44 = vld [vmem:[#allocation2] sm:$0xff]
    %v45 = vld [vmem:[#allocation2 + $0x8] sm:$0xff]
    %v46 = vld [vmem:[#allocation2 + $0x10] sm:$0xff]
    %v47 = vld [vmem:[#allocation2 + $0x18] sm:$0xff]
    %v48 = vld [vmem:[#allocation2 + $0x20] sm:$0xff]
    %v49 = vld [vmem:[#allocation2 + $0x28] sm:$0xff]
    %v50 = vld [vmem:[#allocation2 + $0x30] sm:$0xff]
    %v51 = vld [vmem:[#allocation2 + $0x38] sm:$0xff]
    %v52 = vld [vmem:[#allocation2 + $0x40] sm:$0xff]
    %v53 = vld [vmem:[#allocation2 + $0x48] sm:$0xff]
    %v54 = vld [vmem:[#allocation2 + $0x50] sm:$0xff]
    %v55 = vld [vmem:[#allocation2 + $0x58] sm:$0xff]
    %v56 = vld [vmem:[#allocation2 + $0x60] sm:$0xff]
    %v57 = vld [vmem:[#allocation2 + $0x68] sm:$0xff]
    %v58 = vld [vmem:[#allocation2 + $0x70] sm:$0xff]
    %v59 = vld [vmem:[#allocation2 + $0x78] sm:$0xff]
    %v60 = vld [vmem:[#allocation5] sm:$0xff]
    %v61 = vld [vmem:[#allocation5 + $0x8] sm:$0xff]
    %v62 = vld [vmem:[#allocation5 + $0x10] sm:$0xff]
    %v63 = vld [vmem:[#allocation5 + $0x18] sm:$0xff]
    %v64 = vld [vmem:[#allocation5 + $0x20] sm:$0xff]
    %v65 = vld [vmem:[#allocation5 + $0x28] sm:$0xff]
    %v66 = vld [vmem:[#allocation5 + $0x30] sm:$0xff]
    %v67 = vld [vmem:[#allocation5 + $0x38] sm:$0xff]
    %v68 = vmul.f32 %v44, %v60
    %v69 = vmul.f32 %v45, %v61
    %v70 = vmul.f32 %v46, %v62
    %v71 = vmul.f32 %v47, %v63
    %v72 = vmul.f32 %v48, %v64
    %v73 = vmul.f32 %v49, %v65
    %v74 = vmul.f32 %v50, %v66
    %v75 = vmul.f32 %v51, %v67
    %v76 = vmul.f32 %v52, %v60
    %v77 = vmul.f32 %v53, %v61
    %v78 = vmul.f32 %v54, %v62
    %v79 = vmul.f32 %v55, %v63
    %v80 = vmul.f32 %v56, %v64
    %v81 = vmul.f32 %v57, %v65
    %v82 = vmul.f32 %v58, %v66
    %v83 = vmul.f32 %v59, %v67
    %84 = vst [vmem:[#allocation7] sm:$0xff] %v68
    %85 = vst [vmem:[#allocation7 + $0x8] sm:$0xff] %v69
    %86 = vst [vmem:[#allocation7 + $0x10] sm:$0xff] %v70
    %87 = vst [vmem:[#allocation7 + $0x18] sm:$0xff] %v71
    %88 = vst [vmem:[#allocation7 + $0x20] sm:$0xff] %v72
    %89 = vst [vmem:[#allocation7 + $0x28] sm:$0xff] %v73
    %90 = vst [vmem:[#allocation7 + $0x30] sm:$0xff] %v74
    %91 = vst [vmem:[#allocation7 + $0x38] sm:$0xff] %v75
    %92 = vst [vmem:[#allocation7 + $0x40] sm:$0xff] %v76
    %93 = vst [vmem:[#allocation7 + $0x48] sm:$0xff] %v77
    %94 = vst [vmem:[#allocation7 + $0x50] sm:$0xff] %v78
    %95 = vst [vmem:[#allocation7 + $0x58] sm:$0xff] %v79
    %96 = vst [vmem:[#allocation7 + $0x60] sm:$0xff] %v80
    %97 = vst [vmem:[#allocation7 + $0x68] sm:$0xff] %v81
    %98 = vst [vmem:[#allocation7 + $0x70] sm:$0xff] %v82
    %99 = vst [vmem:[#allocation7 + $0x78] sm:$0xff] %v83
    // Predicated region
    $region18: #{tpu_custom_call.1} parent=1 // pred_check
      _
    $region19: #{tpu_custom_call.1} parent=1 // pred_check_branch
      %101 = sbr.rel (0) target = $region21
    $region20: #{tpu_custom_call.1} parent=1 // pred_region
      %103 = vsyncadd [#allocation4], 0
      %s104 = sshll.u32 [#allocation7], 4
      %s105 = int_to_ptr.vmem [resolvable:$true] %s104
      %s106 = sshll.u32 %s2, 4
      %s107 = int_to_ptr.hbm [resolvable:$true] %s106
      %112 = dma.vmem_to_hbm [thread:$0]  %s105, 2048, %s107, [#allocation4], 128, 128, 8
    $region21: #{tpu_custom_call.1} parent=1 // pred_fallthru
      _
    // Predicated region
    $region22: #{tpu_custom_call.1} parent=1 // pred_check
      _
    $region23: #{tpu_custom_call.1} parent=1 // pred_check_branch
      %114 = sbr.rel (0) target = $region25
    $region24: #{tpu_custom_call.1} parent=1 // pred_region
      %116 = dma.done [#allocation4], 2048
    $region25: #{tpu_custom_call.1} parent=1 // pred_fallthru
      _
    %117 = vsyncpa [#allocation3], 1
    %118 = vsyncpa [#allocation6], 1
    %119 = vsyncpa [#allocation4], 1

</llo_original>
